<compile_context>
chip_gen: v5e
topology: v5e:2x2
jax: 0.10.0
libtpu: 0.0.40
codegen_flags: <defaults>
</compile_context>

<pallas_src>
import functools

import numpy as np
import jax
import jax.numpy as jnp
from jax import lax
from jax.experimental import pallas as pl
from jax.experimental.pallas import tpu as pltpu


def _fused_res_block_kernel(*refs, layer_dims, kw, pad, l_in, res, neg_slope):
    """Fused ResBlock1d forward for a single batch element.

    refs = (x_ref, w0, b0, w1, b1, ..., o_ref, pad_buf, slab_buf)

      x_ref    : (1, Cin0, L)                  input block (channels-first, L lane-dense)
      w_i      : (Cout_i, Kw*Cin_i)            im2col-flattened conv weights
      b_i      : (Cout_i, 1)                   biases
      o_ref    : (1, Cout_last, L_out)         output block
      pad_buf  : (C_max, L + 2*pad)  f32 VMEM  zero-padded per-layer input
      slab_buf : (Kw*C_max, L)       f32 VMEM  im2col slab
    """
    n_layers = len(layer_dims)
    x_ref = refs[0]
    w_refs = refs[1:1 + 2 * n_layers:2]
    b_refs = refs[2:2 + 2 * n_layers:2]
    o_ref = refs[1 + 2 * n_layers]
    pad_buf = refs[2 + 2 * n_layers]
    slab_buf = refs[3 + 2 * n_layers]

    x0 = x_ref[0].astype(jnp.float32)               # (Cin0, L); L is the lane dim
    cur = x0
    m = l_in
    for i, (cin, cout) in enumerate(layer_dims):
        is_last = (i + 1 == n_layers)
        m_out = m + 2 * pad - kw + 1

        # --- zero-padded input for this layer, kept entirely in VMEM --------
        if pad > 0:
            pad_buf[...] = jnp.zeros_like(pad_buf)   # keep halo columns zero
        pad_buf[0:cin, pad:pad + m] = cur

        # --- build im2col slab: row (k*cin + ci) at col l = x_pad[ci, l + k] -
        for k in range(kw):
            slab_buf[k * cin:(k + 1) * cin, 0:m_out] = pad_buf[0:cin, k:k + m_out]

        # --- one matmul per layer (K = kw*cin), spatial axis lane-dense ------
        acc = jnp.dot(w_refs[i][...], slab_buf[0:kw * cin, 0:m_out],
                      preferred_element_type=jnp.float32)        # (cout, m_out)
        acc = acc + b_refs[i][...]                                # (cout, 1) bias

        if not is_last:                                           # LeakyReLU
            acc = jnp.where(acc >= 0, acc, neg_slope * acc)

        cur = acc
        m = m_out

    if res:                                                       # residual add
        cur = cur + x0

    o_ref[0] = cur.astype(o_ref.dtype)


def prepare_params(params):
    """One-time conversion of PyTorch-layout Conv1d params to kernel layout.

    (Cout, Cin, Kw) weights -> (Cout, Kw*Cin) im2col-flattened weights,
    (Cout,) biases          -> (Cout, 1).
    Hoisted out of the forward hot path (perf-review item).
    """
    prepared = []
    for w, b in params:
        cout, cin, kw = w.shape
        w2d = jnp.transpose(w, (0, 2, 1)).reshape(cout, kw * cin)
        prepared.append((w2d, b.reshape(cout, 1)))
    return prepared


def res_block_1d_forward(x, prepared_params, *, kernel_w, stride=1, res=False,
                         neg_slope=0.2):
    """Forward pass matching ResBlock1d.forward (inference / eval mode).

    x               : (N, C, L), (N, 1, C, L) or (N, C) like PyTorch.
    prepared_params : output of prepare_params (list of (w2d, bias2d)).
    """
    assert stride == 1  # TODO(synk): stride > 1 (downsampling conv) not implemented
    # TODO(synk): training-mode dropout not implemented (eval-mode forward only)

    # Shape preamble from the PyTorch module's forward().
    if x.ndim == 4 and x.shape[1] == 1:
        x = x[:, 0]
    if x.ndim == 2:
        x = x[:, :, None]

    N, cin0, L = x.shape
    pad = (kernel_w - 1) // 2

    # Static per-layer (Cin, Cout) and output length.
    layer_dims = []
    cin = cin0
    m = L
    for (w2d, _b) in prepared_params:
        cout, kcin = w2d.shape
        assert kcin == kernel_w * cin
        layer_dims.append((cin, cout))
        m = m + 2 * pad - kernel_w + 1
        cin = cout
    cout_last = layer_dims[-1][1]
    m_last = m
    c_max = max(c for c, _ in layer_dims)

    kern = functools.partial(
        _fused_res_block_kernel,
        layer_dims=tuple(layer_dims), kw=kernel_w, pad=pad, l_in=L,
        res=res, neg_slope=neg_slope)

    in_specs = [pl.BlockSpec((1, cin0, L), lambda n: (n, 0, 0))]
    args = [x]
    for (w2d, b2d) in prepared_params:
        cout, kcin = w2d.shape
        in_specs.append(pl.BlockSpec((cout, kcin), lambda n: (0, 0)))
        in_specs.append(pl.BlockSpec((cout, 1), lambda n: (0, 0)))
        args.append(w2d)
        args.append(b2d)

    # TODO(synk): at production L / channel counts, add an L-tile grid axis
    # (halo = n_layers * pad per side) and set vmem_limit_bytes for v7x's
    # smaller (64 MiB) VMEM; at these toy sizes a full-L block is optimal.
    return pl.pallas_call(
        kern,
        out_shape=jax.ShapeDtypeStruct((N, cout_last, m_last), x.dtype),
        grid=(N,),
        in_specs=in_specs,
        out_specs=pl.BlockSpec((1, cout_last, m_last), lambda n: (n, 0, 0)),
        scratch_shapes=[
            pltpu.VMEM((c_max, L + 2 * pad), jnp.float32),    # padded input
            pltpu.VMEM((kernel_w * c_max, L), jnp.float32),   # im2col slab
        ],
        compiler_params=pltpu.CompilerParams(
            dimension_semantics=("parallel",)),
    )(*args)


def init_params(key, input_dim, output_dim, n_layers, n_dim, kernel_w):
    """Deterministic PyTorch-Conv1d-shaped parameter init (OIW weights)."""
    params = []
    for i in range(n_layers):
        in_dim = input_dim if i == 0 else n_dim
        out_dim = output_dim if i + 1 == n_layers else n_dim
        key, k_w, k_b = jax.random.split(key, 3)
        fan_in = in_dim * kernel_w
        bound = 1.0 / np.sqrt(fan_in)
        w = jax.random.uniform(k_w, (out_dim, in_dim, kernel_w),
                               jnp.float32, -bound, bound)
        b = jax.random.uniform(k_b, (out_dim,), jnp.float32, -bound, bound)
        params.append((w, b))
    return params


def _reference_forward(x, params, *, kernel_w, res, neg_slope=0.2):
    """Plain-JAX reference (mirrors the PyTorch module) for validation."""
    if x.ndim == 4 and x.shape[1] == 1:
        x = x[:, 0]
    if x.ndim == 2:
        x = x[:, :, None]
    pad = (kernel_w - 1) // 2
    skip = x
    n_layers = len(params)
    for i, (w, b) in enumerate(params):
        is_last = (i + 1 == n_layers)
        x = lax.conv_general_dilated(
            x, w, window_strides=(1,), padding=[(pad, pad)],
            dimension_numbers=("NCH", "OIH", "NCH"))
        x = x + b[None, :, None]
        if not is_last:
            x = jnp.where(x >= 0, x, neg_slope * x)
    if res:
        x = x + skip
    return x


if __name__ == "__main__":
    # ResBlock1d(input_dim=4, output_dim=4, n_layers=2, n_dim=8,
    #            kernel_w=3, stride=1, bias=True, res=True)
    input_dim, output_dim = 4, 4
    n_layers, n_dim = 2, 8
    kernel_w = 3
    res = True

    key = jax.random.PRNGKey(0)
    key, k_x = jax.random.split(key)
    x = jax.random.normal(k_x, (2, input_dim, 16), jnp.float32)   # (N, C, L)

    params = init_params(key, input_dim, output_dim, n_layers, n_dim, kernel_w)
    prepared = prepare_params(params)   # layout conversion done once, off the hot path

    out = res_block_1d_forward(x, prepared, kernel_w=kernel_w, stride=1, res=res)
    out = jax.block_until_ready(out)

    ref = _reference_forward(x, params, kernel_w=kernel_w, res=res)
    np.testing.assert_allclose(np.asarray(out), np.asarray(ref),
                               rtol=1e-5, atol=1e-5)
    assert out.shape == (2, output_dim, 16)
    print("KERNEL_OK")
</pallas_src>

<mosaic_0001>
module attributes {stable_mosaic.version = 11 : i64} {
  func.func @_fused_res_block_kernel(%arg0: i32, %arg1: memref<1x4x16xf32, #tpu.memory_space<vmem>>, %arg2: memref<8x12xf32, #tpu.memory_space<vmem>>, %arg3: memref<8x1xf32, #tpu.memory_space<vmem>>, %arg4: memref<4x24xf32, #tpu.memory_space<vmem>>, %arg5: memref<4x1xf32, #tpu.memory_space<vmem>>, %arg6: memref<1x4x16xf32, #tpu.memory_space<vmem>>, %arg7: memref<8x18xf32, #tpu.memory_space<vmem>>, %arg8: memref<24x16xf32, #tpu.memory_space<vmem>>) attributes {dimension_semantics = [#tpu.dimension_semantics<parallel>], iteration_bounds = array<i64: 2>, scalar_prefetch = 0 : i64, scratch_operands = 2 : i64, tpu.core_type = #tpu.core_type<tc>, window_params = [{transform_indices = @transform_0, window_bounds = array<i64: 1, 4, 16>}, {pipeline_mode = #tpu.pipeline_mode<synchronous>, transform_indices = @transform_1, window_bounds = array<i64: 8, 12>}, {pipeline_mode = #tpu.pipeline_mode<synchronous>, transform_indices = @transform_2, window_bounds = array<i64: 8, 1>}, {pipeline_mode = #tpu.pipeline_mode<synchronous>, transform_indices = @transform_3, window_bounds = array<i64: 4, 24>}, {pipeline_mode = #tpu.pipeline_mode<synchronous>, transform_indices = @transform_4, window_bounds = array<i64: 4, 1>}, {transform_indices = @transform_5, window_bounds = array<i64: 1, 4, 16>}]} {
    %c0 = arith.constant 0 : index
    %c0_0 = arith.constant 0 : index
    %c0_1 = arith.constant 0 : index
    %0 = vector.load %arg1[%c0, %c0_0, %c0_1] : memref<1x4x16xf32, #tpu.memory_space<vmem>>, vector<1x4x16xf32>
    %1 = vector.shape_cast %0 : vector<1x4x16xf32> to vector<4x16xf32>
    %cst = arith.constant 0.000000e+00 : f32
    %2 = vector.broadcast %cst : f32 to vector<8x18xf32>
    %c0_2 = arith.constant 0 : index
    %c0_3 = arith.constant 0 : index
    %3 = vector.load %arg7[%c0_2, %c0_3] : memref<8x18xf32, #tpu.memory_space<vmem>>, vector<8x18xf32>
    tpu.vector_store %arg7[%c0_2, %c0_3], %2 {strides = array<i32>} : memref<8x18xf32, #tpu.memory_space<vmem>>, vector<8x18xf32>,
    %c0_4 = arith.constant 0 : index
    %c1 = arith.constant 1 : index
    %4 = vector.load %arg7[%c0_4, %c1] : memref<8x18xf32, #tpu.memory_space<vmem>>, vector<4x16xf32>
    tpu.vector_store %arg7[%c0_4, %c1], %1 {strides = array<i32>} : memref<8x18xf32, #tpu.memory_space<vmem>>, vector<4x16xf32>,
    %c0_5 = arith.constant 0 : index
    %c0_6 = arith.constant 0 : index
    %5 = vector.load %arg7[%c0_5, %c0_6] : memref<8x18xf32, #tpu.memory_space<vmem>>, vector<4x16xf32>
    %c0_7 = arith.constant 0 : index
    %c0_8 = arith.constant 0 : index
    %6 = vector.load %arg8[%c0_7, %c0_8] : memref<24x16xf32, #tpu.memory_space<vmem>>, vector<4x16xf32>
    tpu.vector_store %arg8[%c0_7, %c0_8], %5 {strides = array<i32>} : memref<24x16xf32, #tpu.memory_space<vmem>>, vector<4x16xf32>,
    %c0_9 = arith.constant 0 : index
    %c1_10 = arith.constant 1 : index
    %7 = vector.load %arg7[%c0_9, %c1_10] : memref<8x18xf32, #tpu.memory_space<vmem>>, vector<4x16xf32>
    %c4 = arith.constant 4 : index
    %c0_11 = arith.constant 0 : index
    %8 = vector.load %arg8[%c4, %c0_11] : memref<24x16xf32, #tpu.memory_space<vmem>>, vector<4x16xf32>
    tpu.vector_store %arg8[%c4, %c0_11], %7 {strides = array<i32>} : memref<24x16xf32, #tpu.memory_space<vmem>>, vector<4x16xf32>,
    %c0_12 = arith.constant 0 : index
    %c2 = arith.constant 2 : index
    %9 = vector.load %arg7[%c0_12, %c2] : memref<8x18xf32, #tpu.memory_space<vmem>>, vector<4x16xf32>
    %c8 = arith.constant 8 : index
    %c0_13 = arith.constant 0 : index
    %10 = vector.load %arg8[%c8, %c0_13] : memref<24x16xf32, #tpu.memory_space<vmem>>, vector<4x16xf32>
    tpu.vector_store %arg8[%c8, %c0_13], %9 {strides = array<i32>} : memref<24x16xf32, #tpu.memory_space<vmem>>, vector<4x16xf32>,
    %c0_14 = arith.constant 0 : index
    %c0_15 = arith.constant 0 : index
    %11 = vector.load %arg2[%c0_14, %c0_15] : memref<8x12xf32, #tpu.memory_space<vmem>>, vector<8x12xf32>
    %c0_16 = arith.constant 0 : index
    %c0_17 = arith.constant 0 : index
    %12 = vector.load %arg8[%c0_16, %c0_17] : memref<24x16xf32, #tpu.memory_space<vmem>>, vector<12x16xf32>
    %cst_18 = arith.constant dense<0.000000e+00> : vector<8x16xf32>
    %13 = tpu.matmul %11, %12, %cst_18 {dimension_numbers = #tpu.dot_dimension_numbers<[1], [0], [0], [1], [0, 0, 1, 1], [], []>} : vector<8x12xf32>, vector<12x16xf32>, vector<8x16xf32> -> vector<8x16xf32>
    %c0_19 = arith.constant 0 : index
    %c0_20 = arith.constant 0 : index
    %14 = vector.load %arg3[%c0_19, %c0_20] : memref<8x1xf32, #tpu.memory_space<vmem>>, vector<8x1xf32>
    %15 = vector.broadcast %14 : vector<8x1xf32> to vector<8x16xf32>
    %16 = arith.addf %13, %15 : vector<8x16xf32>
    %cst_21 = arith.constant 0.000000e+00 : f32
    %17 = vector.broadcast %cst_21 : f32 to vector<8x16xf32>
    %18 = arith.cmpf oge, %16, %17 : vector<8x16xf32>
    %cst_22 = arith.constant 2.000000e-01 : f32
    %19 = vector.broadcast %cst_22 : f32 to vector<8x16xf32>
    %20 = arith.mulf %19, %16 : vector<8x16xf32>
    %21 = arith.select %18, %16, %20 : vector<8x16xi1>, vector<8x16xf32>
    %cst_23 = arith.constant 0.000000e+00 : f32
    %22 = vector.broadcast %cst_23 : f32 to vector<8x18xf32>
    %c0_24 = arith.constant 0 : index
    %c0_25 = arith.constant 0 : index
    %23 = vector.load %arg7[%c0_24, %c0_25] : memref<8x18xf32, #tpu.memory_space<vmem>>, vector<8x18xf32>
    tpu.vector_store %arg7[%c0_24, %c0_25], %22 {strides = array<i32>} : memref<8x18xf32, #tpu.memory_space<vmem>>, vector<8x18xf32>,
    %c0_26 = arith.constant 0 : index
    %c1_27 = arith.constant 1 : index
    %24 = vector.load %arg7[%c0_26, %c1_27] : memref<8x18xf32, #tpu.memory_space<vmem>>, vector<8x16xf32>
    tpu.vector_store %arg7[%c0_26, %c1_27], %21 {strides = array<i32>} : memref<8x18xf32, #tpu.memory_space<vmem>>, vector<8x16xf32>,
    %c0_28 = arith.constant 0 : index
    %c0_29 = arith.constant 0 : index
    %25 = vector.load %arg7[%c0_28, %c0_29] : memref<8x18xf32, #tpu.memory_space<vmem>>, vector<8x16xf32>
    %c0_30 = arith.constant 0 : index
    %c0_31 = arith.constant 0 : index
    %26 = vector.load %arg8[%c0_30, %c0_31] : memref<24x16xf32, #tpu.memory_space<vmem>>, vector<8x16xf32>
    tpu.vector_store %arg8[%c0_30, %c0_31], %25 {strides = array<i32>} : memref<24x16xf32, #tpu.memory_space<vmem>>, vector<8x16xf32>,
    %c0_32 = arith.constant 0 : index
    %c1_33 = arith.constant 1 : index
    %27 = vector.load %arg7[%c0_32, %c1_33] : memref<8x18xf32, #tpu.memory_space<vmem>>, vector<8x16xf32>
    %c8_34 = arith.constant 8 : index
    %c0_35 = arith.constant 0 : index
    %28 = vector.load %arg8[%c8_34, %c0_35] : memref<24x16xf32, #tpu.memory_space<vmem>>, vector<8x16xf32>
    tpu.vector_store %arg8[%c8_34, %c0_35], %27 {strides = array<i32>} : memref<24x16xf32, #tpu.memory_space<vmem>>, vector<8x16xf32>,
    %c0_36 = arith.constant 0 : index
    %c2_37 = arith.constant 2 : index
    %29 = vector.load %arg7[%c0_36, %c2_37] : memref<8x18xf32, #tpu.memory_space<vmem>>, vector<8x16xf32>
    %c16 = arith.constant 16 : index
    %c0_38 = arith.constant 0 : index
    %30 = vector.load %arg8[%c16, %c0_38] : memref<24x16xf32, #tpu.memory_space<vmem>>, vector<8x16xf32>
    tpu.vector_store %arg8[%c16, %c0_38], %29 {strides = array<i32>} : memref<24x16xf32, #tpu.memory_space<vmem>>, vector<8x16xf32>,
    %c0_39 = arith.constant 0 : index
    %c0_40 = arith.constant 0 : index
    %31 = vector.load %arg4[%c0_39, %c0_40] : memref<4x24xf32, #tpu.memory_space<vmem>>, vector<4x24xf32>
    %c0_41 = arith.constant 0 : index
    %c0_42 = arith.constant 0 : index
    %32 = vector.load %arg8[%c0_41, %c0_42] : memref<24x16xf32, #tpu.memory_space<vmem>>, vector<24x16xf32>
    %cst_43 = arith.constant dense<0.000000e+00> : vector<4x16xf32>
    %33 = tpu.matmul %31, %32, %cst_43 {dimension_numbers = #tpu.dot_dimension_numbers<[1], [0], [0], [1], [0, 0, 1, 1], [], []>} : vector<4x24xf32>, vector<24x16xf32>, vector<4x16xf32> -> vector<4x16xf32>
    %c0_44 = arith.constant 0 : index
    %c0_45 = arith.constant 0 : index
    %34 = vector.load %arg5[%c0_44, %c0_45] : memref<4x1xf32, #tpu.memory_space<vmem>>, vector<4x1xf32>
    %35 = vector.broadcast %34 : vector<4x1xf32> to vector<4x16xf32>
    %36 = arith.addf %33, %35 : vector<4x16xf32>
    %37 = arith.addf %36, %1 : vector<4x16xf32>
    %c0_46 = arith.constant 0 : index
    %c0_47 = arith.constant 0 : index
    %c0_48 = arith.constant 0 : index
    %38 = vector.load %arg6[%c0_46, %c0_47, %c0_48] : memref<1x4x16xf32, #tpu.memory_space<vmem>>, vector<1x4x16xf32>
    %39 = vector.shape_cast %38 : vector<1x4x16xf32> to vector<4x16xf32>
    %40 = vector.shape_cast %37 : vector<4x16xf32> to vector<1x4x16xf32>
    tpu.vector_store %arg6[%c0_46, %c0_47, %c0_48], %40 {strides = array<i32>} : memref<1x4x16xf32, #tpu.memory_space<vmem>>, vector<1x4x16xf32>,
    return
  }
  func.func @transform_0(%arg0: i32) -> (i32, i32, i32) {
    %c0_i32 = arith.constant 0 : i32
    %c0_i32_0 = arith.constant 0 : i32
    %c0_i32_1 = arith.constant 0 : i32
    return %arg0, %c0_i32, %c0_i32_0 : i32, i32, i32
  }
  func.func @transform_1(%arg0: i32) -> (i32, i32) {
    %c0_i32 = arith.constant 0 : i32
    %c0_i32_0 = arith.constant 0 : i32
    %c0_i32_1 = arith.constant 0 : i32
    return %c0_i32, %c0_i32_0 : i32, i32
  }
  func.func @transform_2(%arg0: i32) -> (i32, i32) {
    %c0_i32 = arith.constant 0 : i32
    %c0_i32_0 = arith.constant 0 : i32
    %c0_i32_1 = arith.constant 0 : i32
    return %c0_i32, %c0_i32_0 : i32, i32
  }
  func.func @transform_3(%arg0: i32) -> (i32, i32) {
    %c0_i32 = arith.constant 0 : i32
    %c0_i32_0 = arith.constant 0 : i32
    %c0_i32_1 = arith.constant 0 : i32
    return %c0_i32, %c0_i32_0 : i32, i32
  }
  func.func @transform_4(%arg0: i32) -> (i32, i32) {
    %c0_i32 = arith.constant 0 : i32
    %c0_i32_0 = arith.constant 0 : i32
    %c0_i32_1 = arith.constant 0 : i32
    return %c0_i32, %c0_i32_0 : i32, i32
  }
  func.func @transform_5(%arg0: i32) -> (i32, i32, i32) {
    %c0_i32 = arith.constant 0 : i32
    %c0_i32_0 = arith.constant 0 : i32
    %c0_i32_1 = arith.constant 0 : i32
    return %arg0, %c0_i32, %c0_i32_0 : i32, i32, i32
  }
}

</mosaic_0001>

<llo_original>
// kernel: tpu_custom_call.1
$region0: #{tpu_custom_call.1}
  #allocation0 [shape = 'u32[]', space=smem, size = 0x4, offset = 0x4, fixed_abs, tag = 'smem constant byte address 0x4 - core index']
  #allocation1 [shape = 'u32[72,128]{1,0:T(1,128)}', space=vmem, size = 0x9000, scoped, tag = 'internal scratch']
  #allocation2 [shape = 'f32[8,18]{1,0:T(8,128)}', space=vmem, size = 0x1000, scoped, tag = 'scratch operand']
  #allocation3 [shape = 'f32[24,16]{1,0:T(8,128)}', space=vmem, size = 0x3000, scoped, tag = 'scratch operand']
  %s0 = inlined_call_operand.vmem [shape: f32[2,4,16], index: 0, kind: input, shape index: {}]
  %s1 = inlined_call_operand.hbm [shape: f32[8,12], index: 1, kind: input, shape index: {}]
  %s2 = inlined_call_operand.vmem [shape: f32[8,1], index: 2, kind: input, shape index: {}]
  %s3 = inlined_call_operand.vmem [shape: f32[4,24], index: 3, kind: input, shape index: {}]
  %s4 = inlined_call_operand.vmem [shape: f32[4,1], index: 4, kind: input, shape index: {}]
  %s5 = inlined_call_operand.hbm [shape: f32[2,4,16], index: 5, kind: output, shape index: {}]
  %s6 = sld [smem:[#allocation0]]
  $region57: #{tpu_custom_call.1} parent=0
    _
  %s8 = ssub.s32 1, %s6
  %s9 = scalar_select 0, %s8, %s6
  $region1: #{tpu_custom_call.1} parent=0
    #allocation4 [shape = 'u8[4096]{0}', space=vmem, size = 0x1000, scoped, tag = 'input window, operand 1, single buffered']
    #allocation5 [shape = 's32[2]{0}', space=sflag, size = 0x8, scoped, tag = 'scoped memory for tpu_custom_call.1']
    #allocation6 [shape = 's32[2]{0}', space=sflag, size = 0x8, scoped, tag = 'scoped memory for tpu_custom_call.1']
    #allocation7 [shape = 'u8[4096]{0}', space=vmem, size = 0x1000, scoped, tag = 'output window, operand 0']
    %10 = vsyncpa [#allocation5], 0
    %11 = vsyncpa [#allocation6], 0
    %s12 = scalar_lea.sflag [#allocation6], 1
    %13 = vsyncpa %s12, 0
    loop: start=0, step=1, limit=4
    $region2: #{tpu_custom_call.1} parent=1 // loop_pre_header
      _
    $region3: #{tpu_custom_call.1} parent=1 // loop_header
      %s15 = sphi 0, %s19
      %p16 = scmp.ge.s32.totalorder %s15, 4
      %s25 = sphi 0, %s27
      %s28 = sphi 0, %s25
      %s29 = sphi 0, %s28
      %s45 = sphi 0, %s29
      %s49 = sphi 0, %s49
      %s51 = sphi 0, %s49
      %s52 = sphi 0, %s51
      %s66 = sphi 0, %s52
      %s70 = sphi 0, %s70
      %s72 = sphi 0, %s70
      %s73 = sphi 0, %s72
      %s87 = sphi 0, %s73
      %s91 = sphi 0, %s91
      %s93 = sphi 0, %s91
      %s94 = sphi 0, %s93
      %s108 = sphi 0, %s94
      %s112 = sphi 0, %s112
      %s114 = sphi 0, %s112
      %s115 = sphi 0, %s114
      %s129 = sphi 0, %s115
      %s135 = sphi 0, %s137
      %s138 = sphi 0, %s135
      %s139 = sphi 0, %s138
      %s155 = sphi 0, %s139
    $region4: #{tpu_custom_call.1} parent=1 // loop_header_branch
      %18 = sbr.rel (%p16) target = $region8
    $region5: #{tpu_custom_call.1} parent=1 // loop_body
      %s20 = ssub.s32 %s15, 1
      %s21 = ssub.s32 %s15, 2
      %s22 = sadd.s32 %s15, 1
      %s23 = ssub.s32 %s15, %s22
      %p24 = scmp.eq.s32.totalorder %s23, 0
      %s26 = sadd.s32 %s25, 1
      %s27 = scalar_select %p24, %s25, %s26
      %p30 = pneg %p24
      %p31 = scmp.eq.s32.totalorder %s15, 1
      %p32 = por %p30, %p31
      %p33 = scmp.ne.s32.totalorder %s25, %s28
      %p34 = scmp.eq.s32.totalorder %s15, 0
      %p35 = por %p33, %p34
      %p36 = scmp.ne.s32.totalorder %s25, %s28
      %p37 = scmp.eq.s32.totalorder %s20, 1
      %p38 = por %p36, %p37
      %p39 = scmp.ne.s32.totalorder %s28, %s29
      %p40 = scmp.eq.s32.totalorder %s20, 0
      %p41 = por %p39, %p40
      %p42 = scmp.ne.s32.totalorder %s28, %s29
      %p43 = scmp.eq.s32.totalorder %s21, 1
      %p44 = por %p42, %p43
      %p46 = scmp.ne.s32.totalorder %s29, %s45
      %p47 = scmp.eq.s32.totalorder %s21, 0
      %p48 = por %p46, %p47
      %s50 = sadd.s32 %s49, 1
      %p53 = scmp.eq.s32.totalorder %s15, 1
      %p54 = scmp.ne.s32.totalorder %s49, %s51
      %p55 = scmp.eq.s32.totalorder %s15, 0
      %p56 = por %p54, %p55
      %p57 = scmp.ne.s32.totalorder %s49, %s51
      %p58 = scmp.eq.s32.totalorder %s20, 1
      %p59 = por %p57, %p58
      %p60 = scmp.ne.s32.totalorder %s51, %s52
      %p61 = scmp.eq.s32.totalorder %s20, 0
      %p62 = por %p60, %p61
      %p63 = scmp.ne.s32.totalorder %s51, %s52
      %p64 = scmp.eq.s32.totalorder %s21, 1
      %p65 = por %p63, %p64
      %p67 = scmp.ne.s32.totalorder %s52, %s66
      %p68 = scmp.eq.s32.totalorder %s21, 0
      %p69 = por %p67, %p68
      %s71 = sadd.s32 %s70, 1
      %p74 = scmp.eq.s32.totalorder %s15, 1
      %p75 = scmp.ne.s32.totalorder %s70, %s72
      %p76 = scmp.eq.s32.totalorder %s15, 0
      %p77 = por %p75, %p76
      %p78 = scmp.ne.s32.totalorder %s70, %s72
      %p79 = scmp.eq.s32.totalorder %s20, 1
      %p80 = por %p78, %p79
      %p81 = scmp.ne.s32.totalorder %s72, %s73
      %p82 = scmp.eq.s32.totalorder %s20, 0
      %p83 = por %p81, %p82
      %p84 = scmp.ne.s32.totalorder %s72, %s73
      %p85 = scmp.eq.s32.totalorder %s21, 1
      %p86 = por %p84, %p85
      %p88 = scmp.ne.s32.totalorder %s73, %s87
      %p89 = scmp.eq.s32.totalorder %s21, 0
      %p90 = por %p88, %p89
      %s92 = sadd.s32 %s91, 1
      %p95 = scmp.eq.s32.totalorder %s15, 1
      %p96 = scmp.ne.s32.totalorder %s91, %s93
      %p97 = scmp.eq.s32.totalorder %s15, 0
      %p98 = por %p96, %p97
      %p99 = scmp.ne.s32.totalorder %s91, %s93
      %p100 = scmp.eq.s32.totalorder %s20, 1
      %p101 = por %p99, %p100
      %p102 = scmp.ne.s32.totalorder %s93, %s94
      %p103 = scmp.eq.s32.totalorder %s20, 0
      %p104 = por %p102, %p103
      %p105 = scmp.ne.s32.totalorder %s93, %s94
      %p106 = scmp.eq.s32.totalorder %s21, 1
      %p107 = por %p105, %p106
      %p109 = scmp.ne.s32.totalorder %s94, %s108
      %p110 = scmp.eq.s32.totalorder %s21, 0
      %p111 = por %p109, %p110
      %s113 = sadd.s32 %s112, 1
      %p116 = scmp.eq.s32.totalorder %s15, 1
      %p117 = scmp.ne.s32.totalorder %s112, %s114
      %p118 = scmp.eq.s32.totalorder %s15, 0
      %p119 = por %p117, %p118
      %p120 = scmp.ne.s32.totalorder %s112, %s114
      %p121 = scmp.eq.s32.totalorder %s20, 1
      %p122 = por %p120, %p121
      %p123 = scmp.ne.s32.totalorder %s114, %s115
      %p124 = scmp.eq.s32.totalorder %s20, 0
      %p125 = por %p123, %p124
      %p126 = scmp.ne.s32.totalorder %s114, %s115
      %p127 = scmp.eq.s32.totalorder %s21, 1
      %p128 = por %p126, %p127
      %p130 = scmp.ne.s32.totalorder %s115, %s129
      %p131 = scmp.eq.s32.totalorder %s21, 0
      %p132 = por %p130, %p131
      %s133 = ssub.s32 %s15, %s22
      %p134 = scmp.eq.s32.totalorder %s133, 0
      %s136 = sadd.s32 %s135, 1
      %s137 = scalar_select %p134, %s135, %s136
      %p140 = pneg %p134
      %p141 = scmp.eq.s32.totalorder %s15, 1
      %p142 = por %p140, %p141
      %p143 = scmp.ne.s32.totalorder %s135, %s138
      %p144 = scmp.eq.s32.totalorder %s15, 0
      %p145 = por %p143, %p144
      %p146 = scmp.ne.s32.totalorder %s135, %s138
      %p147 = scmp.eq.s32.totalorder %s20, 1
      %p148 = por %p146, %p147
      %p149 = scmp.ne.s32.totalorder %s138, %s139
      %p150 = scmp.eq.s32.totalorder %s20, 0
      %p151 = por %p149, %p150
      %p152 = scmp.ne.s32.totalorder %s138, %s139
      %p153 = scmp.eq.s32.totalorder %s21, 1
      %p154 = por %p152, %p153
      %p156 = scmp.ne.s32.totalorder %s139, %s155
      %p157 = scmp.eq.s32.totalorder %s21, 0
      %p158 = por %p156, %p157
      %p159 = scmp.le.s32.totalorder 1, %s15
      %p160 = scmp.lt.s32.totalorder %s15, 3
      %p161 = pnand %p159, %p160
      %p162 = pneg %p161
      // Predicated region
      $region9: #{tpu_custom_call.1} parent=5 // pred_check
        _
      $region10: #{tpu_custom_call.1} parent=5 // pred_check_branch
        %164 = sbr.rel (%p161) target = $region12
      $region11: #{tpu_custom_call.1} parent=5 // pred_region
        %s165 = ssub.s32 %s15, 1
        // Predicated region
        $region13: #{tpu_custom_call.1} parent=11 // pred_check
          %p166 = pneg %p62
        $region14: #{tpu_custom_call.1} parent=11 // pred_check_branch
          %168 = sbr.rel (%p166) target = $region16
        $region15: #{tpu_custom_call.1} parent=11 // pred_region
          %170 = vsyncadd [#allocation5], 0
          %s172 = sshll.u32 %s1, 4
          %s173 = int_to_ptr.hbm [resolvable:$true] %s172
          %s174 = sshll.u32 [#allocation4], 4
          %s175 = int_to_ptr.vmem [resolvable:$true] %s174
          %177 = dma.hbm_to_vmem [thread:$0]  %s173, 128, %s175, [#allocation5]
        $region16: #{tpu_custom_call.1} parent=11 // pred_fallthru
          _
        // Predicated region
        $region17: #{tpu_custom_call.1} parent=11 // pred_check
          %p178 = pneg %p83
        $region18: #{tpu_custom_call.1} parent=11 // pred_check_branch
          %180 = sbr.rel (%p178) target = $region20
        $region19: #{tpu_custom_call.1} parent=11 // pred_region
          _
        $region20: #{tpu_custom_call.1} parent=11 // pred_fallthru
          _
        // Predicated region
        $region21: #{tpu_custom_call.1} parent=11 // pred_check
          %p181 = pneg %p104
        $region22: #{tpu_custom_call.1} parent=11 // pred_check_branch
          %183 = sbr.rel (%p181) target = $region24
        $region23: #{tpu_custom_call.1} parent=11 // pred_region
          _
        $region24: #{tpu_custom_call.1} parent=11 // pred_fallthru
          _
        // Predicated region
        $region25: #{tpu_custom_call.1} parent=11 // pred_check
          %p184 = pneg %p125
        $region26: #{tpu_custom_call.1} parent=11 // pred_check_branch
          %186 = sbr.rel (%p184) target = $region28
        $region27: #{tpu_custom_call.1} parent=11 // pred_region
          _
        $region28: #{tpu_custom_call.1} parent=11 // pred_fallthru
          _
      $region12: #{tpu_custom_call.1} parent=5 // pred_fallthru
        _
      %p187 = scmp.lt.s32.totalorder %s15, 2
      // Predicated region
      $region29: #{tpu_custom_call.1} parent=5 // pred_check
        %p188 = pneg %p187
      $region30: #{tpu_custom_call.1} parent=5 // pred_check_branch
        %190 = sbr.rel (%p188) target = $region32
      $region31: #{tpu_custom_call.1} parent=5 // pred_region
        // Predicated region
        $region33: #{tpu_custom_call.1} parent=31 // pred_check
          %p191 = pneg %p35
        $region34: #{tpu_custom_call.1} parent=31 // pred_check_branch
          %193 = sbr.rel (%p191) target = $region36
        $region35: #{tpu_custom_call.1} parent=31 // pred_region
          %p194 = scmp.lt.s32.totalorder %s15, 1
          %s195 = scalar_select %p194, %s15, 1
          %s196 = smul.addr %s195, 4
          %s197 = scalar_lea.vmem %s0, %s196
        $region36: #{tpu_custom_call.1} parent=31 // pred_fallthru
          _
      $region32: #{tpu_custom_call.1} parent=5 // pred_fallthru
        _
      %p198 = scmp.le.s32.totalorder 1, %s15
      %p199 = scmp.lt.s32.totalorder %s15, 3
      %p200 = pnand %p198, %p199
      %p201 = pneg %p200
      // Predicated region
      $region37: #{tpu_custom_call.1} parent=5 // pred_check
        _
      $region38: #{tpu_custom_call.1} parent=5 // pred_check_branch
        %203 = sbr.rel (%p200) target = $region40
      $region39: #{tpu_custom_call.1} parent=5 // pred_region
        %s204 = ssub.s32 %s15, 1
        // Predicated region
        $region41: #{tpu_custom_call.1} parent=39 // pred_check
          %p205 = pneg %p62
        $region42: #{tpu_custom_call.1} parent=39 // pred_check_branch
          %207 = sbr.rel (%p205) target = $region44
        $region43: #{tpu_custom_call.1} parent=39 // pred_region
          %209 = dma.done [#allocation5], 128
        $region44: #{tpu_custom_call.1} parent=39 // pred_fallthru
          _
        %p210 = scmp.lt.s32.totalorder %s20, 1
        %s211 = scalar_select %p210, %s20, 1
        %s212 = smul.addr %s211, 4
        %s213 = scalar_lea.vmem %s0, %s212
        %p214 = pneg %p41
        %p215 = pneg %p38
        %p216 = pneg %p62
        %p217 = pneg %p59
        %p218 = pneg %p83
        %p219 = pneg %p80
        %p220 = pneg %p104
        %p221 = pneg %p101
        %p222 = pneg %p125
        %p223 = pneg %p122
        %p224 = pneg %p151
        %p225 = pneg %p148
        %s226 = sand.u32 %s138, 1
        %s227 = scalar_lea.sflag [#allocation6], %s226
        %s228 = sand.u32 %s138, 1
        %s229 = smul.addr %s228, 4
        %s230 = scalar_lea.vmem [#allocation7], %s229
        %p231 = scmp.lt.s32.totalorder %s20, 1
        %s232 = scalar_select %p231, %s20, 1
        %s233 = smul.addr %s232, 4
        %s234 = scalar_lea.vmem %s0, %s233
        %v235 = vld [vmem:[%s234] sm:$0xf]
        %vm236 = vcmask 146432
        %237 = vst.msk [vmem:[#allocation2] sm:$0xff] %vm236, 0.0
        %239 = vrot.lane.b32.xlu0 %v235, 1
        %v240 = vpop.permute.xlu0 %239
        %vm242 = vcmask 134152
        %243 = vst.msk [vmem:[#allocation2] sm:$0xf] %vm242, %v240
        %v244 = vld [vmem:[#allocation2] sm:$0xf]
        %vm245 = vcmask 125952
        %246 = vst.msk [vmem:[#allocation3] sm:$0xf] %vm245, %v244
        %v247 = vld [vmem:[#allocation2] sm:$0xf]
        %249 = vrot.lane.b32.xlu0 %v247, 127
        %v250 = vpop.permute.xlu0 %249
        %252 = vst.msk [vmem:[#allocation3 + $0x4] sm:$0xf] %vm245, %v250
        %v253 = vld [vmem:[#allocation2] sm:$0xf]
        %255 = vrot.lane.b32.xlu0 %v253, 126
        %v256 = vpop.permute.xlu0 %255
        %258 = vst.msk [vmem:[#allocation3 + $0x8] sm:$0xf] %vm245, %v256
        %v259 = vld [vmem:[#allocation4] sm:$0xff]
        %v260 = vld [vmem:[#allocation3] sm:$0xff]
        %v261 = vld [vmem:[#allocation3 + $0x8] sm:$0xf]
        %v262 = vld [vmem:[%s2] sm:$0xff]
        %264 = vset.pattern.permute.xlu0 0
        %265 = vperm.xlu0 %264, %v262
        %v266 = vpop.permute.xlu0 %265
        %vm268 = vcmask 97280
        %v270 = vsel %vm268, %v259, 0
        %vm272 = vcmask 1043456
        %v274 = vsel %vm272, %v261, 0
        %276 = vmatpush.msra.mxu0 0.0
        %277 = vmatpush.msra.mxu0 0.0
        %278 = vmatpush.msra.mxu0 0.0
        %279 = vmatpush.msra.mxu0 0.0
        %280 = vmatpush.msra.mxu0 0.0
        %281 = vmatpush.msra.mxu0 0.0
        %282 = vmatpush.msra.mxu0 0.0
        %283 = vmatpush.msra.mxu0 0.0
        %284 = vmatpush.msra.mxu0 0.0
        %285 = vmatpush.msra.mxu0 0.0
        %286 = vmatpush.msra.mxu0 0.0
        %287 = vmatpush.msra.mxu0 0.0
        %288 = vmatpush.msra.mxu0 0.0
        %289 = vmatpush.msra.mxu0 0.0
        %290 = vmatpush.msra.mxu0 %v274
        %291 = vmatpush.msra.mxu0 %v260
        %292 = vmatmul.f32.gmra.mxu0 %v270
        %v293 = vpop.f32.mrf.mxu0
        %v294 = vadd.f32 %v266, %v293
        %295 = vdwg.mxu0
        %vm296 = vcmp.ge.f32.partialorder %v294, 0.0
        %v297 = vmul.f32 %v294, 0.2
        %v298 = vsel %vm296, %v294, %v297
        %299 = vst.msk [vmem:[#allocation2] sm:$0xff] %vm236, 0.0
        %301 = vrot.lane.b32.xlu0 %v298, 1
        %v302 = vpop.permute.xlu0 %301
        %vm304 = vcmask 138248
        %305 = vst.msk [vmem:[#allocation2] sm:$0xff] %vm304, %v302
        %v306 = vld [vmem:[#allocation2] sm:$0xff]
        %vm307 = vcmask 130048
        %308 = vst.msk [vmem:[#allocation3] sm:$0xff] %vm307, %v306
        %v309 = vld [vmem:[#allocation2] sm:$0xff]
        %311 = vrot.lane.b32.xlu0 %v309, 127
        %v312 = vpop.permute.xlu0 %311
        %314 = vst.msk [vmem:[#allocation3 + $0x8] sm:$0xff] %vm307, %v312
        %v315 = vld [vmem:[#allocation2] sm:$0xff]
        %317 = vrot.lane.b32.xlu0 %v315, 126
        %v318 = vpop.permute.xlu0 %317
        %320 = vst.msk [vmem:[#allocation3 + $0x10] sm:$0xff] %vm307, %v318
        %v321 = vld [vmem:[%s3] sm:$0xf]
        %v322 = vld [vmem:[#allocation3] sm:$0xff]
        %v323 = vld [vmem:[#allocation3 + $0x8] sm:$0xff]
        %v324 = vld [vmem:[#allocation3 + $0x10] sm:$0xff]
        %v325 = vld [vmem:[%s4] sm:$0xf]
        %327 = vset.pattern.permute.xlu0 0
        %328 = vperm.xlu0 %327, %v325
        %v329 = vpop.permute.xlu0 %328
        %vm331 = vcmask 195584
        %v333 = vsel %vm331, %v321, 0
        %335 = vmatpush.msra.mxu0 0.0
        %336 = vmatpush.msra.mxu0 0.0
        %337 = vmatpush.msra.mxu0 0.0
        %338 = vmatpush.msra.mxu0 0.0
        %339 = vmatpush.msra.mxu0 0.0
        %340 = vmatpush.msra.mxu0 0.0
        %341 = vmatpush.msra.mxu0 0.0
        %342 = vmatpush.msra.mxu0 0.0
        %343 = vmatpush.msra.mxu0 0.0
        %344 = vmatpush.msra.mxu0 0.0
        %345 = vmatpush.msra.mxu0 0.0
        %346 = vmatpush.msra.mxu0 0.0
        %347 = vmatpush.msra.mxu0 0.0
        %348 = vmatpush.msra.mxu0 %v324
        %349 = vmatpush.msra.mxu0 %v323
        %350 = vmatpush.msra.mxu0 %v322
        %351 = vmatmul.f32.gmra.mxu0 %v333
        %v352 = vpop.f32.mrf.mxu0
        %v353 = vadd.f32 %v329, %v352
        %354 = vdwg.mxu0
        %v355 = vadd.f32 %v353, %v235
        %356 = vst.msk [vmem:[%s230] sm:$0xf] %vm245, %v355
        %s357 = sand.u32 %s138, 1
        %s358 = scalar_lea.sflag [#allocation6], %s357
        %s359 = sand.u32 %s138, 1
        %s360 = smul.addr %s359, 4
        %s361 = scalar_lea.vmem [#allocation7], %s360
        // Predicated region
        $region45: #{tpu_custom_call.1} parent=39 // pred_check
          %p362 = pneg %p148
        $region46: #{tpu_custom_call.1} parent=39 // pred_check_branch
          %364 = sbr.rel (%p362) target = $region48
        $region47: #{tpu_custom_call.1} parent=39 // pred_region
          %366 = vsyncadd %s358, 0
          %s367 = smul.addr %s20, 4
          %s368 = scalar_lea.hbm %s5, %s367
          %s370 = sshll.u32 %s361, 4
          %s371 = int_to_ptr.vmem [resolvable:$true] %s370
          %s372 = sshll.u32 %s368, 4
          %s373 = int_to_ptr.hbm [resolvable:$true] %s372
          %375 = dma.vmem_to_hbm [thread:$0]  %s371, 64, %s373, %s358
        $region48: #{tpu_custom_call.1} parent=39 // pred_fallthru
          _
      $region40: #{tpu_custom_call.1} parent=5 // pred_fallthru
        _
      %p376 = scmp.le.s32.totalorder 2, %s15
      // Predicated region
      $region49: #{tpu_custom_call.1} parent=5 // pred_check
        %p377 = pneg %p376
      $region50: #{tpu_custom_call.1} parent=5 // pred_check_branch
        %379 = sbr.rel (%p377) target = $region52
      $region51: #{tpu_custom_call.1} parent=5 // pred_region
        %s380 = ssub.s32 %s15, 2
        // Predicated region
        $region53: #{tpu_custom_call.1} parent=51 // pred_check
          %p381 = pneg %p154
        $region54: #{tpu_custom_call.1} parent=51 // pred_check_branch
          %383 = sbr.rel (%p381) target = $region56
        $region55: #{tpu_custom_call.1} parent=51 // pred_region
          %s384 = sand.u32 %s139, 1
          %s385 = scalar_lea.sflag [#allocation6], %s384
          %s386 = sand.u32 %s139, 1
          %s387 = smul.addr %s386, 4
          %s388 = scalar_lea.vmem [#allocation7], %s387
          %390 = dma.done %s385, 64
        $region56: #{tpu_custom_call.1} parent=51 // pred_fallthru
          _
      $region52: #{tpu_custom_call.1} parent=5 // pred_fallthru
        _
    $region6: #{tpu_custom_call.1} parent=1 // loop_footer
      %s19 = sadd.s32 1, %s15
    $region7: #{tpu_custom_call.1} parent=1 // loop_footer_branch
      %14 = sbr.rel target = $region3
    $region8: #{tpu_custom_call.1} parent=1 // loop_exit
      _
    %391 = vsyncpa [#allocation5], 1
    %s392 = scalar_lea.sflag [#allocation5], 1
    %393 = vsyncpa %s392, 1
    %394 = vsyncpa [#allocation6], 1
    %s395 = scalar_lea.sflag [#allocation6], 1
    %396 = vsyncpa %s395, 1

</llo_original>
